<compile_context>
chip_gen: v7x
topology: tpu7x:2x2x1
jax: 0.10.0
libtpu: 0.0.40
codegen_flags: <defaults>
</compile_context>

<pallas_src>
import functools
import math

import numpy as np
import jax
import jax.numpy as jnp
from jax.experimental import pallas as pl
from jax.experimental.pallas import tpu as pltpu

# ----------------------------- configuration --------------------------------
IN_CHANNELS = 1
OUT_CHANNELS = 1
GROWTH_RATE = 32
N_BLOCKS = 2
N_BLOCK_LAYERS = 4
LFF_CHANNELS = 32
ALPHA = 0.9
PRE_CHANNELS = 32
POST_CHANNELS = 32
EPS = 1e-5                                   # torch.nn.InstanceNorm2d default
C = 32                                       # common group width (pre = growth = lff = post)
PATCH_ROWS = 9 * C * N_BLOCK_LAYERS + C      # 1184: 4 full tap groups + centre rows of the 5th
COUT_PAD = 8                                 # final 1-channel conv padded to 8 MXU rows
STEM_K = 16                                  # stem patch rows padded 9 -> 16


# ------------------------------- fused kernel --------------------------------
def _fused_kernel(*refs, names, shifts, hw, b_tile, alpha):
    x_ref, masks_ref = refs[0], refs[1]
    nw = len(names)
    w = dict(zip(names, refs[2:2 + nw]))
    out_ref = refs[2 + nw]
    patch_ref = refs[3 + nw]                 # bf16 (PATCH_ROWS, L): cached tap chunks
    bo_ref = refs[4 + nw]                    # f32  (3*C, L): parked block outputs

    inv_hw = 1.0 / hw
    L = b_tile * hw

    # ---------------- helpers ----------------
    def emit_group(feats_f32, base_row):
        """Cast a 32-channel group to bf16 once, roll/mask its 9 taps once and
        park the chunks at static rows of the patch scratch (no re-rolling of
        the growing dense concat, no concatenate copies)."""
        fb = feats_f32.astype(jnp.bfloat16)
        for k, shift in enumerate(shifts):
            if shift == 0:                               # centre tap: no roll, no mask
                v = fb
            else:
                v = pltpu.roll(fb, shift=shift, axis=1) * masks_ref[k]
            patch_ref[base_row + k * C: base_row + (k + 1) * C, :] = v

    def conv_from_patch(w_ref, n_rows):
        return jnp.dot(w_ref[...], patch_ref[0:n_rows, :],
                       preferred_element_type=jnp.float32)

    def instance_norm(y):
        # affine=False InstanceNorm; per-sample, per-channel stats over the
        # spatial lanes of each fused-batch segment (two-pass, f32).
        parts = []
        for s in range(b_tile):
            ys = y[:, s * hw:(s + 1) * hw]
            mean = jnp.sum(ys, axis=-1, keepdims=True) * inv_hw
            cen = ys - mean
            var = jnp.sum(cen * cen, axis=-1, keepdims=True) * inv_hw
            parts.append(cen * jax.lax.rsqrt(var + EPS))
        return parts[0] if b_tile == 1 else jnp.concatenate(parts, axis=1)

    def mish(y):
        # y * tanh(softplus(y)) == y * (e^2 + 2e) / (e^2 + 2e + 2),  e = exp(y)
        e = jnp.exp(jnp.minimum(y, 20.0))
        nmr = e * (e + 2.0)
        return y * nmr * pl.reciprocal(nmr + 2.0, approx=True)

    def cim(y):                               # InstanceNorm(affine=False) -> Mish
        return mish(instance_norm(y))

    # ---------------- stem: 3x3 conv on the single input channel ----------------
    x_in = x_ref[0]                                       # (1, L) f32
    xb = x_in.astype(jnp.bfloat16)
    chunks = []
    for k, shift in enumerate(shifts):
        if shift == 0:
            chunks.append(xb)
        else:
            chunks.append(pltpu.roll(xb, shift=shift, axis=1) * masks_ref[k, 0:1, :])
    chunks.append(jnp.zeros((STEM_K - 9, L), jnp.bfloat16))
    stem_patch = jnp.concatenate(chunks, axis=0)          # (16, L) bf16, one-off & tiny
    h = cim(jnp.dot(w["pre0"][...], stem_patch, preferred_element_type=jnp.float32))

    # ---------------- second pre block ----------------
    emit_group(h, 0)
    h = cim(conv_from_patch(w["pre1"], 9 * C))
    bo_ref[0:C, :] = h                                    # park pre-block output

    # ---------------- residual dense blocks ----------------
    for b in range(N_BLOCKS):
        cur = bo_ref[b * C:(b + 1) * C, :]                # block input from scratch
        emit_group(cur, 0)
        for l in range(N_BLOCK_LAYERS):
            f = cim(conv_from_patch(w[f"rdb{b}_l{l}"], 9 * C * (l + 1)))
            if l + 1 < N_BLOCK_LAYERS:
                emit_group(f, 9 * C * (l + 1))            # append the new group's taps
            else:
                # last dense feature: only its centre-tap rows feed the 1x1 LFF
                patch_ref[9 * C * N_BLOCK_LAYERS:PATCH_ROWS, :] = f.astype(jnp.bfloat16)
        # local feature fusion: 1x1 conv read off the centre-tap rows of the
        # patch via zero-expanded weights (single MXU matmul, no gather/concat)
        lff = conv_from_patch(w[f"rdb{b}_lffw"], PATCH_ROWS) + w[f"rdb{b}_lffb"][...]
        out_b = lff + bo_ref[b * C:(b + 1) * C, :]        # residual add (f32)
        bo_ref[(b + 1) * C:(b + 2) * C, :] = out_b        # park block output

    # ---------------- global feature fuse (1x1 Conv-IN-Mish) ----------------
    g = cim(jnp.dot(w["gff"][...], bo_ref[...].astype(jnp.bfloat16),
                    preferred_element_type=jnp.float32))

    # ---------------- post blocks + boosting blend ----------------
    emit_group(g, 0)
    p = cim(conv_from_patch(w["post0"], 9 * C))
    emit_group(p, 0)
    y = conv_from_patch(w["post1w"], 9 * C) + w["post1b"][...]   # (COUT_PAD, L)
    out_ref[0] = alpha * x_ref[0] + (1.0 - alpha) * y[0:1, :]


# ------------------------------ wrapper / glue --------------------------------
def _tap_offsets_and_masks(h, w):
    """Per-tap flat offsets (dy*w+dx) and destination-validity masks for a
    3x3 'same' conv on an (h, w) image flattened row-major to h*w lanes."""
    hw = h * w
    offs, masks = [], np.zeros((9, hw), np.float32)
    yy, xx = np.meshgrid(np.arange(h), np.arange(w), indexing="ij")
    k = 0
    for dy in (-1, 0, 1):
        for dx in (-1, 0, 1):
            offs.append(dy * w + dx)
            ok = ((yy + dy >= 0) & (yy + dy < h) & (xx + dx >= 0) & (xx + dx < w))
            masks[k] = ok.reshape(-1).astype(np.float32)
            k += 1
    return offs, masks


def _probe_roll_is_nproll():
    """Probe pltpu.roll direction: True if it matches np.roll (x[0] -> index shift)."""
    def k(x_ref, o_ref):
        o_ref[...] = pltpu.roll(x_ref[...], shift=1, axis=1)
    x = jnp.broadcast_to(jnp.arange(128, dtype=jnp.float32), (8, 128))
    y = np.asarray(pl.pallas_call(
        k, out_shape=jax.ShapeDtypeStruct((8, 128), jnp.float32))(x))
    if y[0, 1] == 0.0:
        return True
    if y[0, 1] == 2.0:
        return False
    raise ValueError("unexpected pltpu.roll semantics")


def _pick_b_tile(n, hw, max_lanes=1024):
    """Fuse samples onto the lane axis (fills the MXU); keep >= 2 grid steps
    when possible so a dual-TensorCore part can shard the parallel axis."""
    cands = [d for d in range(1, n + 1) if n % d == 0 and d * hw <= max_lanes]
    multi = [d for d in cands if n // d >= 2]
    pool = multi if multi else cands
    return max(pool) if pool else 1


def boosting_net_forward(x_nchw, params, *, b_tile=None, roll_like_np=True):
    n, cin, h, w = x_nchw.shape
    assert cin == IN_CHANNELS
    hw = h * w
    assert hw % 128 == 0, "H*W must keep the lane axis 128-aligned"
    if b_tile is None:
        b_tile = _pick_b_tile(n, hw)
    assert n % b_tile == 0
    L = b_tile * hw
    g_steps = n // b_tile

    # (N,1,H,W) -> (G, 1, B_TILE*H*W): batch fused onto the lane axis.
    x = x_nchw.astype(jnp.float32).reshape(g_steps, 1, L)

    offs, masks_np = _tap_offsets_and_masks(h, w)
    # shift realising  rolled[p] = feats[p + off]  for the probed roll direction
    shifts = tuple(((-o) % L) if roll_like_np else (o % L) for o in offs)
    # Destination masks, tiled over the fused batch tile (they also kill roll
    # leakage across sample boundaries), pre-broadcast to the group width and
    # pre-cast to bf16 so the kernel never re-emits broadcasts or casts.
    masks = jnp.asarray(
        np.broadcast_to(np.tile(masks_np, (1, b_tile))[:, None, :], (9, C, L)).copy(),
        dtype=jnp.bfloat16)

    names = tuple(params.keys())
    arrays = [params[k] for k in names]

    in_specs = [
        pl.BlockSpec((1, 1, L), lambda i: (i, 0, 0)),       # per-tile input
        pl.BlockSpec((9, C, L), lambda i: (0, 0, 0)),       # tap masks (resident)
    ] + [pl.BlockSpec(a.shape, lambda i: (0, 0)) for a in arrays]   # resident weights

    kernel = functools.partial(
        _fused_kernel, names=names, shifts=shifts, hw=hw, b_tile=b_tile, alpha=ALPHA)

    flops = sum(2 * n * hw * a.shape[0] * a.shape[1]
                for a in arrays if a.ndim == 2 and a.shape[1] > 1)
    transcendentals = n * hw * C * (2 + N_BLOCKS * N_BLOCK_LAYERS + 2)
    bytes_accessed = int(sum(int(a.size) * a.dtype.itemsize for a in arrays)
                         + int(x.size) * 4 + int(masks.size) * 2 + n * hw * 4)

    out = pl.pallas_call(
        kernel,
        out_shape=jax.ShapeDtypeStruct((g_steps, 1, L), jnp.float32),
        grid=(g_steps,),
        in_specs=in_specs,
        out_specs=pl.BlockSpec((1, 1, L), lambda i: (i, 0, 0)),
        scratch_shapes=[
            pltpu.VMEM((PATCH_ROWS, L), jnp.bfloat16),          # cached tap chunks
            pltpu.VMEM((C * (N_BLOCKS + 1), L), jnp.float32),   # parked block outputs
        ],
        compiler_params=pltpu.CompilerParams(
            # "parallel" shards the batch-tile axis across TensorCores on
            # multi-core parts; on v7x switch to pltpu.CORE_PARALLEL if needed.
            dimension_semantics=("parallel",)),
        cost_estimate=pl.CostEstimate(
            flops=int(flops), transcendentals=int(transcendentals),
            bytes_accessed=bytes_accessed),
    )(x, masks, *arrays)
    return out.reshape(n, OUT_CHANNELS, h, w)


# ----------------------------- parameters & packing ---------------------------
def init_torch_params(key):
    """Random parameters in PyTorch layout (f32).  Conv biases in front of
    InstanceNorm2d(affine=False) cancel exactly and are therefore omitted."""
    def conv_w(k, cout, cin, ksz):
        fan_in = cin * ksz * ksz
        return jax.random.normal(k, (cout, cin, ksz, ksz), jnp.float32) / math.sqrt(fan_in)

    keys = iter(jax.random.split(key, 64))
    p = {}
    p["pre0"] = conv_w(next(keys), PRE_CHANNELS, IN_CHANNELS, 3)
    p["pre1"] = conv_w(next(keys), PRE_CHANNELS, PRE_CHANNELS, 3)
    for b in range(N_BLOCKS):
        cin0 = PRE_CHANNELS if b == 0 else LFF_CHANNELS
        for l in range(N_BLOCK_LAYERS):
            p[f"rdb{b}_l{l}"] = conv_w(next(keys), GROWTH_RATE, cin0 + l * GROWTH_RATE, 3)
        cat_c = cin0 + N_BLOCK_LAYERS * GROWTH_RATE
        p[f"rdb{b}_lffw"] = conv_w(next(keys), LFF_CHANNELS, cat_c, 1)
        p[f"rdb{b}_lffb"] = 0.01 * jax.random.normal(next(keys), (LFF_CHANNELS,), jnp.float32)
    gff_c = PRE_CHANNELS + N_BLOCKS * LFF_CHANNELS
    p["gff"] = conv_w(next(keys), POST_CHANNELS, gff_c, 1)
    p["post0"] = conv_w(next(keys), POST_CHANNELS, POST_CHANNELS, 3)
    p["post1w"] = conv_w(next(keys), OUT_CHANNELS, POST_CHANNELS, 3)
    p["post1b"] = 0.01 * jax.random.normal(next(keys), (OUT_CHANNELS,), jnp.float32)
    return p


def _pack_3x3(w):
    """(Cout, Cin, 3, 3) torch weights -> (Cout, Cin*9) bf16 columns matching the
    patch-scratch row order: group-major (groups of C channels), tap-major
    within a group, channel within a tap chunk."""
    co, ci = w.shape[0], w.shape[1]
    if ci == IN_CHANNELS:                                  # stem: single 1-channel group
        wk = np.zeros((co, STEM_K), np.float32)
        wk[:, :9] = np.asarray(w, np.float32).reshape(co, 9)
        return jnp.asarray(wk, jnp.bfloat16)
    assert ci % C == 0, "non-multiple-of-32 channel groups not supported"
    g = ci // C
    wk = np.asarray(w, np.float32).reshape(co, g, C, 9).transpose(0, 1, 3, 2)
    return jnp.asarray(wk.reshape(co, g * 9 * C), jnp.bfloat16)


def _pack_lff_1x1(w):
    """(Cout, 5*C, 1, 1) 1x1 LFF weights -> zero-expanded (Cout, PATCH_ROWS) bf16
    hitting only the centre-tap rows of the patch scratch (the last dense group
    only materialises its centre rows)."""
    co, ci = w.shape[0], w.shape[1]
    assert ci == C * (N_BLOCK_LAYERS + 1)
    w1 = np.asarray(w, np.float32).reshape(co, ci)
    wz = np.zeros((co, PATCH_ROWS), np.float32)
    for g in range(N_BLOCK_LAYERS):                        # full groups: centre tap k=4
        wz[:, 9 * C * g + 4 * C: 9 * C * g + 5 * C] = w1[:, g * C:(g + 1) * C]
    wz[:, 9 * C * N_BLOCK_LAYERS:PATCH_ROWS] = w1[:, N_BLOCK_LAYERS * C:]
    return jnp.asarray(wz, jnp.bfloat16)


def pack_params(tp):
    """Torch-layout params -> kernel layout (bf16 matmul weights, f32 biases)."""
    kp = {}
    kp["pre0"] = _pack_3x3(tp["pre0"])
    kp["pre1"] = _pack_3x3(tp["pre1"])
    for b in range(N_BLOCKS):
        for l in range(N_BLOCK_LAYERS):
            kp[f"rdb{b}_l{l}"] = _pack_3x3(tp[f"rdb{b}_l{l}"])
        kp[f"rdb{b}_lffw"] = _pack_lff_1x1(tp[f"rdb{b}_lffw"])
        kp[f"rdb{b}_lffb"] = jnp.asarray(tp[f"rdb{b}_lffb"], jnp.float32).reshape(-1, 1)
    kp["gff"] = jnp.asarray(tp["gff"], jnp.float32).reshape(POST_CHANNELS, -1).astype(jnp.bfloat16)
    kp["post0"] = _pack_3x3(tp["post0"])
    w_last = _pack_3x3(tp["post1w"])                       # (1, 9*C) bf16
    kp["post1w"] = jnp.zeros((COUT_PAD, 9 * C), jnp.bfloat16).at[:OUT_CHANNELS].set(w_last)
    kp["post1b"] = jnp.zeros((COUT_PAD, 1), jnp.float32).at[:OUT_CHANNELS, 0].set(
        jnp.asarray(tp["post1b"], jnp.float32))
    return kp


# ------------------------------ pure-JAX reference -----------------------------
def _mish_ref(y):
    return y * jnp.tanh(jax.nn.softplus(y))


def _inorm_ref(y):
    mean = jnp.mean(y, axis=(2, 3), keepdims=True)
    cen = y - mean
    var = jnp.mean(cen * cen, axis=(2, 3), keepdims=True)
    return cen * jax.lax.rsqrt(var + EPS)


def _conv_ref(x, w, b=None):
    y = jax.lax.conv_general_dilated(
        x.astype(jnp.bfloat16), jnp.asarray(w, jnp.bfloat16),
        window_strides=(1, 1), padding="SAME",
        dimension_numbers=("NCHW", "OIHW", "NCHW"),
        preferred_element_type=jnp.float32)
    if b is not None:
        y = y + b.reshape(1, -1, 1, 1)
    return y


def reference_forward(x, tp):
    """Pure-JAX mirror of the PyTorch forward (bf16 convs, f32 elementwise)."""
    cim = lambda z, w: _mish_ref(_inorm_ref(_conv_ref(z, w)))
    h = cim(x, tp["pre0"])
    h = cim(h, tp["pre1"])
    outs, cur = [h], h
    for b in range(N_BLOCKS):
        cat = cur
        for l in range(N_BLOCK_LAYERS):
            f = cim(cat, tp[f"rdb{b}_l{l}"])
            cat = jnp.concatenate([cat, f], axis=1)
        lff = _conv_ref(cat, tp[f"rdb{b}_lffw"], tp[f"rdb{b}_lffb"])
        cur = lff + cur
        outs.append(cur)
    g = cim(jnp.concatenate(outs, axis=1), tp["gff"])
    g = cim(g, tp["post0"])
    y = _conv_ref(g, tp["post1w"], tp["post1b"])
    return ALPHA * x + (1.0 - ALPHA) * y


# ----------------------------------- main --------------------------------------
if __name__ == "__main__":
    key = jax.random.PRNGKey(0)
    k_param, k_input = jax.random.split(key)
    torch_params = init_torch_params(k_param)
    kernel_params = pack_params(torch_params)

    # PyTorch-style NCHW input: (batch=4, in_channels=1, H=16, W=16)
    x = jax.random.normal(k_input, (4, IN_CHANNELS, 16, 16), jnp.float32)

    roll_like_np = _probe_roll_is_nproll()
    fwd = jax.jit(functools.partial(
        boosting_net_forward, params=kernel_params, roll_like_np=roll_like_np))
    y = fwd(x)
    jax.block_until_ready(y)
    assert y.shape == x.shape, y.shape
    assert bool(jnp.all(jnp.isfinite(y)))

    # numeric check against a lax.conv-based reference of the PyTorch forward
    y_ref = jax.jit(functools.partial(reference_forward, tp=torch_params))(x)
    err = float(jnp.max(jnp.abs(y - y_ref)))
    assert err < 5e-2, f"kernel/reference mismatch: max abs err = {err}"

    print("KERNEL_OK")
</pallas_src>

<mosaic_0001>
module attributes {stable_mosaic.version = 11 : i64} {
  func.func @k(%arg0: memref<8x128xf32, #tpu.memory_space<vmem>>, %arg1: memref<8x128xf32, #tpu.memory_space<vmem>>) attributes {dimension_semantics = [], scalar_prefetch = 0 : i64, scratch_operands = 0 : i64, tpu.core_type = #tpu.core_type<tc>} {
    %c0 = arith.constant 0 : index
    %c0_0 = arith.constant 0 : index
    %0 = vector.load %arg0[%c0, %c0_0] : memref<8x128xf32, #tpu.memory_space<vmem>>, vector<8x128xf32>
    %c1_i32 = arith.constant 1 : i32
    %1 = tpu.dynamic_rotate %0 by %c1_i32 dim 1 : vector<8x128xf32>, i32 -> vector<8x128xf32>
    %c0_1 = arith.constant 0 : index
    %c0_2 = arith.constant 0 : index
    %2 = vector.load %arg1[%c0_1, %c0_2] : memref<8x128xf32, #tpu.memory_space<vmem>>, vector<8x128xf32>
    tpu.vector_store %arg1[%c0_1, %c0_2], %1 {strides = array<i32>} : memref<8x128xf32, #tpu.memory_space<vmem>>, vector<8x128xf32>,
    return
  }
}

</mosaic_0001>

<llo_original>
// kernel: tpu_custom_call.1
$region0: #{tpu_custom_call.1}
  #allocation0 [shape = 'u32[]', space=smem, size = 0x4, offset = 0x4, fixed_abs, tag = 'smem constant byte address 0x4 - core index']
  #allocation1 [shape = 'u32[144,128]{1,0:T(1,128)}', space=vmem, size = 0x12000, scoped, tag = 'internal scratch']
  %s0 = inlined_call_operand.hbm [shape: f32[8,128], index: 0, kind: input, shape index: {}]
  %s1 = inlined_call_operand.hbm [shape: f32[8,128], index: 1, kind: output, shape index: {}]
  %s2 = sld [smem:[#allocation0]]
  $region18: #{tpu_custom_call.1} parent=0
    _
  %s4 = ssub.s32 1, %s2
  %s5 = scalar_select 0, %s4, %s2
  $region1: #{tpu_custom_call.1} parent=0
    #allocation2 [shape = 'u8[4096]{0}', space=vmem, size = 0x1000, scoped, tag = 'input window, operand 0, single buffered']
    #allocation3 [shape = 's32[1]{0}', space=sflag, size = 0x4, scoped, tag = 'scoped memory for tpu_custom_call.1']
    #allocation4 [shape = 's32[1]{0}', space=sflag, size = 0x4, scoped, tag = 'scoped memory for tpu_custom_call.1']
    #allocation5 [shape = 'u8[4096]{0}', space=vmem, size = 0x1000, scoped, tag = 'output window, operand 0, single buffered']
    %6 = vsyncpa [#allocation3], 0
    %7 = vsyncpa [#allocation4], 0
    // Predicated region
    $region2: #{tpu_custom_call.1} parent=1 // pred_check
      _
    $region3: #{tpu_custom_call.1} parent=1 // pred_check_branch
      %9 = sbr.rel (0) target = $region5
    $region4: #{tpu_custom_call.1} parent=1 // pred_region
      %s11 = ssub.s32 128, 128
      %12 = vsyncadd [#allocation3], %s11
      %s14 = sshll.u32 [#allocation2], 4
      %s15 = int_to_ptr.vmem [resolvable:$true] %s14
      %17 = dma.hbm_to_vmem [thread:$0]  %s0, 128, %s15, [#allocation3]
    $region5: #{tpu_custom_call.1} parent=1 // pred_fallthru
      _
    // Predicated region
    $region6: #{tpu_custom_call.1} parent=1 // pred_check
      _
    $region7: #{tpu_custom_call.1} parent=1 // pred_check_branch
      %19 = sbr.rel (0) target = $region9
    $region8: #{tpu_custom_call.1} parent=1 // pred_region
      %20 = dma.done [#allocation3], 128
    $region9: #{tpu_custom_call.1} parent=1 // pred_fallthru
      _
    %v21 = vld [vmem:[#allocation2] sm:$0xff]
    %22 = vrot.lane.b32.xlu0 %v21, 1
    %v23 = vpop.permute.xlu0 %22
    %24 = vst [vmem:[#allocation5] sm:$0xff] %v23
    // Predicated region
    $region10: #{tpu_custom_call.1} parent=1 // pred_check
      _
    $region11: #{tpu_custom_call.1} parent=1 // pred_check_branch
      %26 = sbr.rel (0) target = $region13
    $region12: #{tpu_custom_call.1} parent=1 // pred_region
      %s28 = ssub.s32 128, 128
      %29 = vsyncadd [#allocation4], %s28
      %s31 = sshll.u32 [#allocation5], 4
      %s32 = int_to_ptr.vmem [resolvable:$true] %s31
      %34 = dma.vmem_to_hbm [thread:$0]  %s32, 128, %s1, [#allocation4]
    $region13: #{tpu_custom_call.1} parent=1 // pred_fallthru
      _
    // Predicated region
    $region14: #{tpu_custom_call.1} parent=1 // pred_check
      _
    $region15: #{tpu_custom_call.1} parent=1 // pred_check_branch
      %36 = sbr.rel (0) target = $region17
    $region16: #{tpu_custom_call.1} parent=1 // pred_region
      %37 = dma.done [#allocation4], 128
    $region17: #{tpu_custom_call.1} parent=1 // pred_fallthru
      _
    %38 = vsyncpa [#allocation3], 1
    %39 = vsyncpa [#allocation4], 1

</llo_original>
